<compile_context>
chip_gen: v5e
topology: v5e:2x2
jax: 0.10.0
libtpu: 0.0.40
codegen_flags: <defaults>
</compile_context>

<pallas_src>
import jax
import jax.numpy as jnp
from jax.experimental import pallas as pl
from jax.experimental.pallas import tpu as pltpu


LANES = 128
IN_FEATURES = 2
SAMPLES_PER_ROW = LANES // IN_FEATURES      # 64 samples per packed row
ROW_ALIGN = 8                               # sublane alignment
MAX_TILE_ROWS = 4096                        # (4096, 128) f32 = 2 MiB per block


def mlp_kernel(params_ref, x_ref, o_ref):
    """Fused affine map on lane-packed input.

    params_ref: SMEM f32[6] = [w00, w11, w10, w01, b0, b1] with w[k, n] the
        fused (in, out) weight, b the fused bias.
    x_ref/o_ref: VMEM f32[tile_rows, 128]; lane 2j holds feature 0 of sample j
        within the row, lane 2j+1 holds feature 1.
    """
    # Period-2 lane patterns (built once per grid step; a handful of VPU ops).
    lane = jax.lax.broadcasted_iota(jnp.int32, (1, LANES), 1)
    is_even = (lane % 2) == 0
    w_same = jnp.where(is_even, params_ref[0], params_ref[1])  # same-lane weight
    w_next = jnp.where(is_even, params_ref[2], 0.0)            # weight on x[l+1]
    w_prev = jnp.where(is_even, 0.0, params_ref[3])            # weight on x[l-1]
    bias = jnp.where(is_even, params_ref[4], params_ref[5])

    x = x_ref[...]                                  # (tile_rows, 128) f32
    x_next = pltpu.roll(x, LANES - 1, axis=1)       # lane l <- x[l+1]  (XLU)
    x_prev = pltpu.roll(x, 1, axis=1)               # lane l <- x[l-1]  (XLU)

    # Wraparound lanes (0 and 127) get multiplied by zeroed weights, so rows
    # never mix samples across the pair boundary.
    y = x * w_same + x_next * w_next + x_prev * w_prev + bias
    o_ref[...] = y.astype(o_ref.dtype)


def _row_tile(rows):
    """Sublane-aligned row tile: big blocks, >=2 grid steps when enough work."""
    if rows > MAX_TILE_ROWS:
        return MAX_TILE_ROWS
    if rows >= 2 * ROW_ALIGN:
        # Split roughly in half (8-aligned) so v7x's two TensorCores both work.
        return max(ROW_ALIGN, (rows // 2 // ROW_ALIGN) * ROW_ALIGN)
    return rows


def make_mlp_forward(w1, b1, w2, b2):
    """Fold the two Linear layers once; return a jitted packed-lane forward."""
    w_fold = (w2 @ w1).T.astype(jnp.float32)            # (in, out) = (2, 2)
    b_fold = (w2 @ b1 + b2).astype(jnp.float32)         # (2,)
    params = jnp.stack([w_fold[0, 0], w_fold[1, 1],
                        w_fold[1, 0], w_fold[0, 1],
                        b_fold[0], b_fold[1]])           # f32[6] -> SMEM

    @jax.jit
    def forward(x):
        batch = x.shape[0]
        x2d = x.reshape(batch, -1).astype(jnp.float32)   # X.view(B, -1)
        assert x2d.shape[1] == IN_FEATURES, "MLP expects 2 flattened features"

        # Pad batch to a multiple of 512 (64 samples/row * 8 sublane rows) so
        # the packed array is (rows, 128) with rows a multiple of 8.
        pad_to = SAMPLES_PER_ROW * ROW_ALIGN
        padded = ((batch + pad_to - 1) // pad_to) * pad_to
        if padded != batch:
            x2d = jnp.pad(x2d, ((0, padded - batch), (0, 0)))
        rows = padded // SAMPLES_PER_ROW
        x_packed = x2d.reshape(rows, LANES)              # zero-copy reshape

        tr = _row_tile(rows)
        grid = (pl.cdiv(rows, tr),)

        y_packed = pl.pallas_call(
            mlp_kernel,
            out_shape=jax.ShapeDtypeStruct((rows, LANES), jnp.float32),
            grid=grid,
            in_specs=[
                pl.BlockSpec(memory_space=pltpu.MemorySpace.SMEM),   # params
                pl.BlockSpec((tr, LANES), lambda i: (i, 0)),         # x tiles
            ],
            out_specs=pl.BlockSpec((tr, LANES), lambda i: (i, 0)),
            compiler_params=pltpu.CompilerParams(
                dimension_semantics=("parallel",),
                # Blocks are <= 2 MiB; double-buffered in+out ~8 MiB, well
                # within every generation's VMEM (incl. v7x's 64 MiB).
                vmem_limit_bytes=32 * 1024 * 1024,
            ),
        )(params, x_packed)

        return y_packed.reshape(padded, IN_FEATURES)[:batch]

    return forward


def reference_forward(x, w1, b1, w2, b2):
    # Unfused reference: exactly the PyTorch module's two nn.Linear layers.
    x2d = x.reshape(x.shape[0], -1)
    h = x2d @ w1.T + b1
    return h @ w2.T + b2


if __name__ == "__main__":
    key = jax.random.PRNGKey(0)
    k_x, k_x2, k_w1, k_b1, k_w2, k_b2 = jax.random.split(key, 6)

    in_features, hidden, out_features = 2, 2, 2

    # Deterministic params mimicking nn.Linear's U(-1/sqrt(fan_in), 1/sqrt(fan_in)).
    bound1 = 1.0 / jnp.sqrt(jnp.float32(in_features))
    bound2 = 1.0 / jnp.sqrt(jnp.float32(hidden))
    w1 = jax.random.uniform(k_w1, (hidden, in_features), jnp.float32, -bound1, bound1)
    b1 = jax.random.uniform(k_b1, (hidden,), jnp.float32, -bound1, bound1)
    w2 = jax.random.uniform(k_w2, (out_features, hidden), jnp.float32, -bound2, bound2)
    b2 = jax.random.uniform(k_b2, (out_features,), jnp.float32, -bound2, bound2)

    forward = make_mlp_forward(w1, b1, w2, b2)

    # Small shape matching the test module (batch x 2).
    x = jax.random.normal(k_x, (8, in_features), jnp.float32)
    out = jax.block_until_ready(forward(x))
    ref = reference_forward(x, w1, b1, w2, b2)
    assert out.shape == (8, out_features)
    assert jnp.allclose(out, ref, atol=1e-5, rtol=1e-5), "mismatch vs reference"

    # Extra check: non-multiple batch exercises padding + a 2-step grid.
    x_big = jax.random.normal(k_x2, (1000, in_features), jnp.float32)
    out_big = jax.block_until_ready(forward(x_big))
    ref_big = reference_forward(x_big, w1, b1, w2, b2)
    assert out_big.shape == (1000, out_features)
    assert jnp.allclose(out_big, ref_big, atol=1e-5, rtol=1e-5), "mismatch vs reference (padded)"

    print("KERNEL_OK")
</pallas_src>

<mosaic_0001>
module attributes {stable_mosaic.version = 11 : i64} {
  func.func @mlp_kernel(%arg0: i32, %arg1: memref<6xf32, #tpu.memory_space<smem>>, %arg2: memref<8x128xf32, #tpu.memory_space<vmem>>, %arg3: memref<8x128xf32, #tpu.memory_space<vmem>>) attributes {dimension_semantics = [#tpu.dimension_semantics<parallel>], iteration_bounds = array<i64: 1>, scalar_prefetch = 0 : i64, scratch_operands = 0 : i64, tpu.core_type = #tpu.core_type<tc>, window_params = [{transform_indices = @transform_0, window_bounds = array<i64: 6>}, {transform_indices = @transform_1, window_bounds = array<i64: 8, 128>}, {transform_indices = @transform_2, window_bounds = array<i64: 8, 128>}]} {
    %0 = tpu.iota {dimensions = array<i32: 1>} : vector<1x128xi32>
    %c2_i32 = arith.constant 2 : i32
    %c0_i32 = arith.constant 0 : i32
    %1 = arith.cmpi eq, %c2_i32, %c0_i32 : i32
    %c1_i32 = arith.constant 1 : i32
    %2 = arith.select %1, %c1_i32, %c2_i32 : i32
    %3 = vector.broadcast %2 : i32 to vector<1x128xi32>
    %4 = arith.remsi %0, %3 : vector<1x128xi32>
    %c0_i32_0 = arith.constant 0 : i32
    %5 = vector.broadcast %c0_i32_0 : i32 to vector<1x128xi32>
    %6 = arith.cmpi ne, %4, %5 : vector<1x128xi32>
    %c0_i32_1 = arith.constant 0 : i32
    %7 = vector.broadcast %c0_i32_1 : i32 to vector<1x128xi32>
    %8 = arith.cmpi slt, %4, %7 : vector<1x128xi32>
    %c0_i32_2 = arith.constant 0 : i32
    %9 = arith.cmpi slt, %2, %c0_i32_2 : i32
    %10 = vector.broadcast %9 : i1 to vector<1x128xi1>
    %11 = vector.broadcast %10 : vector<1x128xi1> to vector<1x128xi1>
    %12 = arith.xori %8, %11 : vector<1x128xi1>
    %13 = arith.andi %12, %6 : vector<1x128xi1>
    %14 = vector.broadcast %2 : i32 to vector<1x128xi32>
    %15 = arith.addi %4, %14 : vector<1x128xi32>
    %16 = arith.select %13, %15, %4 : vector<1x128xi1>, vector<1x128xi32>
    %c0_i32_3 = arith.constant 0 : i32
    %17 = vector.broadcast %c0_i32_3 : i32 to vector<1x128xi32>
    %18 = arith.cmpi eq, %16, %17 : vector<1x128xi32>
    %c0 = arith.constant 0 : index
    %19 = memref.load %arg1[%c0] : memref<6xf32, #tpu.memory_space<smem>>
    %c1 = arith.constant 1 : index
    %20 = memref.load %arg1[%c1] : memref<6xf32, #tpu.memory_space<smem>>
    %21 = vector.broadcast %19 : f32 to vector<1x128xf32>
    %22 = vector.broadcast %20 : f32 to vector<1x128xf32>
    %23 = arith.select %18, %21, %22 : vector<1x128xi1>, vector<1x128xf32>
    %c2 = arith.constant 2 : index
    %24 = memref.load %arg1[%c2] : memref<6xf32, #tpu.memory_space<smem>>
    %cst = arith.constant 0.000000e+00 : f32
    %25 = vector.broadcast %24 : f32 to vector<1x128xf32>
    %26 = vector.broadcast %cst : f32 to vector<1x128xf32>
    %27 = arith.select %18, %25, %26 : vector<1x128xi1>, vector<1x128xf32>
    %c3 = arith.constant 3 : index
    %28 = memref.load %arg1[%c3] : memref<6xf32, #tpu.memory_space<smem>>
    %cst_4 = arith.constant 0.000000e+00 : f32
    %29 = vector.broadcast %cst_4 : f32 to vector<1x128xf32>
    %30 = vector.broadcast %28 : f32 to vector<1x128xf32>
    %31 = arith.select %18, %29, %30 : vector<1x128xi1>, vector<1x128xf32>
    %c4 = arith.constant 4 : index
    %32 = memref.load %arg1[%c4] : memref<6xf32, #tpu.memory_space<smem>>
    %c5 = arith.constant 5 : index
    %33 = memref.load %arg1[%c5] : memref<6xf32, #tpu.memory_space<smem>>
    %34 = vector.broadcast %32 : f32 to vector<1x128xf32>
    %35 = vector.broadcast %33 : f32 to vector<1x128xf32>
    %36 = arith.select %18, %34, %35 : vector<1x128xi1>, vector<1x128xf32>
    %c0_5 = arith.constant 0 : index
    %c0_6 = arith.constant 0 : index
    %37 = vector.load %arg2[%c0_5, %c0_6] : memref<8x128xf32, #tpu.memory_space<vmem>>, vector<8x128xf32>
    %c127_i32 = arith.constant 127 : i32
    %38 = tpu.dynamic_rotate %37 by %c127_i32 dim 1 : vector<8x128xf32>, i32 -> vector<8x128xf32>
    %c1_i32_7 = arith.constant 1 : i32
    %39 = tpu.dynamic_rotate %37 by %c1_i32_7 dim 1 : vector<8x128xf32>, i32 -> vector<8x128xf32>
    %40 = vector.broadcast %23 : vector<1x128xf32> to vector<8x128xf32>
    %41 = arith.mulf %37, %40 : vector<8x128xf32>
    %42 = vector.broadcast %27 : vector<1x128xf32> to vector<8x128xf32>
    %43 = arith.mulf %38, %42 : vector<8x128xf32>
    %44 = arith.addf %41, %43 : vector<8x128xf32>
    %45 = vector.broadcast %31 : vector<1x128xf32> to vector<8x128xf32>
    %46 = arith.mulf %39, %45 : vector<8x128xf32>
    %47 = arith.addf %44, %46 : vector<8x128xf32>
    %48 = vector.broadcast %36 : vector<1x128xf32> to vector<8x128xf32>
    %49 = arith.addf %47, %48 : vector<8x128xf32>
    %c0_8 = arith.constant 0 : index
    %c0_9 = arith.constant 0 : index
    %50 = vector.load %arg3[%c0_8, %c0_9] : memref<8x128xf32, #tpu.memory_space<vmem>>, vector<8x128xf32>
    tpu.vector_store %arg3[%c0_8, %c0_9], %49 {strides = array<i32>} : memref<8x128xf32, #tpu.memory_space<vmem>>, vector<8x128xf32>,
    return
  }
  func.func @transform_0(%arg0: i32) -> i32 {
    %c0_i32 = arith.constant 0 : i32
    %c0_i32_0 = arith.constant 0 : i32
    return %c0_i32 : i32
  }
  func.func @transform_1(%arg0: i32) -> (i32, i32) {
    %c0_i32 = arith.constant 0 : i32
    %c0_i32_0 = arith.constant 0 : i32
    return %arg0, %c0_i32 : i32, i32
  }
  func.func @transform_2(%arg0: i32) -> (i32, i32) {
    %c0_i32 = arith.constant 0 : i32
    %c0_i32_0 = arith.constant 0 : i32
    return %arg0, %c0_i32 : i32, i32
  }
}

</mosaic_0001>

<llo_original>
// kernel: forward.1
$region0: #{forward.1}
  #allocation0 [shape = 'u32[]', space=smem, size = 0x4, offset = 0x4, fixed_abs, tag = 'smem constant byte address 0x4 - core index']
  #allocation1 [shape = 'u32[72,128]{1,0:T(1,128)}', space=vmem, size = 0x9000, scoped, tag = 'internal scratch']
  %s0 = inlined_call_operand.vmem [shape: f32[6], index: 0, kind: input, shape index: {}]
  %s1 = inlined_call_operand.vmem [shape: f32[8,128], index: 1, kind: input, shape index: {}]
  %s2 = inlined_call_operand.vmem [shape: f32[8,128], index: 2, kind: output, shape index: {}]
  %s3 = sld [smem:[#allocation0]]
  $region22: #{forward.1} parent=0
    _
  %s5 = ssub.s32 1, %s3
  %s6 = scalar_select 0, %s5, %s3
  $region1: #{forward.1} parent=0
    #allocation2 [shape = 'u8[512]{0}', space=smem, size = 0x200, scoped, tag = 'input window, operand 0, single buffered']
    #allocation3 [shape = 's32[1]{0}', space=sflag, size = 0x4, scoped, tag = 'scoped memory for forward.1']
    %7 = vsyncpa [#allocation3], 0
    // Predicated region
    $region2: #{forward.1} parent=1 // pred_check
      _
    $region3: #{forward.1} parent=1 // pred_check_branch
      %9 = sbr.rel (0) target = $region5
    $region4: #{forward.1} parent=1 // pred_region
      %11 = vsyncadd [#allocation3], 0
      %s13 = sshll.u32 %s0, 4
      %s14 = int_to_ptr.vmem [resolvable:$true] %s13
      %16 = dma.vmem_to_smem %s14, 16, [#allocation2], [#allocation3]
    $region5: #{forward.1} parent=1 // pred_fallthru
      _
    // Predicated region
    $region6: #{forward.1} parent=1 // pred_check
      _
    $region7: #{forward.1} parent=1 // pred_check_branch
      %18 = sbr.rel (0) target = $region9
    $region8: #{forward.1} parent=1 // pred_region
      _
    $region9: #{forward.1} parent=1 // pred_fallthru
      _
    // Predicated region
    $region10: #{forward.1} parent=1 // pred_check
      _
    $region11: #{forward.1} parent=1 // pred_check_branch
      %20 = sbr.rel (0) target = $region13
    $region12: #{forward.1} parent=1 // pred_region
      %22 = dma.done [#allocation3], 16
    $region13: #{forward.1} parent=1 // pred_fallthru
      _
    %23 = sfence
    %v24 = vlaneseq
    %v25 = vand.u32 %v24, 127
    %vm26 = vcmp.lt.s32.totalorder %v25, 0
    %v27 = vsub.s32 0, %v25
    %v28 = vsel %vm26, %v27, %v25
    %v29 = vshrl.u32 %v28, 1
    %v30 = vand.u32 %v28, 1
    %v31 = vsub.s32 0, %v30
    %v32 = vsel %vm26, %v31, %v30
    %vm33 = vcmp.ne.s32.totalorder %v32, 0
    %vm34 = vcmp.lt.s32.totalorder %v32, 0
    %vm35 = vmand %vm34, %vm33
    %v36 = vadd.s32 %v32, 2
    %v37 = vsel %vm35, %v36, %v32
    %vm38 = vcmp.eq.s32.totalorder %v37, 0
    %s39 = sld [smem:[#allocation2]]
    %s40 = sld [smem:[#allocation2 + $0x1]]
    %v41 = vstv %s39
    %v42 = vstv %s40
    %v43 = vsel %vm38, %v41, %v42
    %s44 = sld [smem:[#allocation2 + $0x2]]
    %v45 = vstv %s44
    %v46 = vsel %vm38, %v45, 0.0
    %s47 = sld [smem:[#allocation2 + $0x3]]
    %v48 = vstv %s47
    %v49 = vsel %vm38, 0.0, %v48
    %s50 = sld [smem:[#allocation2 + $0x4]]
    %s51 = sld [smem:[#allocation2 + $0x5]]
    %v52 = vstv %s50
    %v53 = vstv %s51
    %v54 = vsel %vm38, %v52, %v53
    %v55 = vld [vmem:[%s1] sm:$0xff]
    %56 = vrot.lane.b32.xlu0 %v55, 127
    %v57 = vpop.permute.xlu0 %56
    %58 = vrot.lane.b32.xlu0 %v55, 1
    %v59 = vpop.permute.xlu0 %58
    %v60 = vmul.f32 %v55, %v43
    %v61 = vmul.f32 %v57, %v46
    %v62 = vadd.f32 %v60, %v61
    %v63 = vmul.f32 %v59, %v49
    %v64 = vadd.f32 %v62, %v63
    %v65 = vadd.f32 %v64, %v54
    %66 = vst [vmem:[%s2] sm:$0xff] %v65
    // Predicated region
    $region14: #{forward.1} parent=1 // pred_check
      _
    $region15: #{forward.1} parent=1 // pred_check_branch
      %68 = sbr.rel (0) target = $region17
    $region16: #{forward.1} parent=1 // pred_region
      _
    $region17: #{forward.1} parent=1 // pred_fallthru
      _
    // Predicated region
    $region18: #{forward.1} parent=1 // pred_check
      _
    $region19: #{forward.1} parent=1 // pred_check_branch
      %70 = sbr.rel (0) target = $region21
    $region20: #{forward.1} parent=1 // pred_region
      _
    $region21: #{forward.1} parent=1 // pred_fallthru
      _
    %71 = vsyncpa [#allocation3], 1

</llo_original>
